<compile_context>
chip_gen: v7x
topology: tpu7x:2x2x1
jax: 0.10.0
libtpu: 0.0.40
codegen_flags: <defaults>
</compile_context>

<pallas_src>
import functools

import jax
import jax.numpy as jnp
import numpy as np
from jax import lax
from jax.experimental import pallas as pl
from jax.experimental.pallas import tpu as pltpu

_LANE = 128


def _round_up(x, m):
    return (x + m - 1) // m * m


def _pick_strip_rows(h):
    """Largest H-strip <= 32 rows that divides H and yields >= 2 strips."""
    for th in (32, 16, 8):
        if h % th == 0 and h // th >= 2:
            return th
    return h


def _mobilev1_kernel(top_ref, core_ref, bot_ref, dw_w_ref, dw_b_ref,
                     pw_w_ref, pw_b_ref, out_ref, *, th, wdim):
    """One (batch, H-strip) tile per grid step.

    top_ref/bot_ref : (1, 1, W, Cp)   halo rows above/below the strip
    core_ref        : (1, TH, W, Cp)  strip of the NHWC (channel-padded) input
    dw_w_ref        : (3, 3, Cp)      depthwise weights (BN scale folded in)
    dw_b_ref        : (1, Cp)         folded depthwise BN bias
    pw_w_ref        : (Cp, Cpo) bf16  pointwise weights (BN scale folded in)
    pw_b_ref        : (1, Cpo)        folded pointwise BN bias
    out_ref         : (1, TH, W, Cpo)
    """
    s = pl.program_id(1)
    n_strips = pl.num_programs(1)

    core = core_ref[0]                                            # (TH, W, Cp)
    # Zero the halo rows at the image border (content of the DMA'd row is ignored).
    top = top_ref[0] * (s > 0).astype(jnp.float32)                # (1, W, Cp)
    bot = bot_ref[0] * (s < n_strips - 1).astype(jnp.float32)     # (1, W, Cp)
    x = jnp.concatenate([top, core, bot], axis=0)                 # (TH+2, W, Cp)

    # Depthwise 3x3: vertical 3-tap filtering per horizontal tap.
    # Only leading-axis (non-tiled) slices here; channels stay dense on lanes.
    u = []
    for kw in range(3):
        u.append(x[0:th] * dw_w_ref[0, kw]
                 + x[1:th + 1] * dw_w_ref[1, kw]
                 + x[2:th + 2] * dw_w_ref[2, kw])

    # Horizontal combine with zero boundary columns (only 2 shifted adds total).
    zcol = jnp.zeros((th, 1, u[1].shape[-1]), u[1].dtype)
    left = jnp.concatenate([zcol, u[0][:, :wdim - 1, :]], axis=1)   # u0 shifted right
    right = jnp.concatenate([u[2][:, 1:, :], zcol], axis=1)         # u2 shifted left
    acc = left + u[1] + right

    # Folded-BN bias + ReLU (scales already folded into dw_w / pw_w).
    dw = jnp.maximum(acc + dw_b_ref[0], 0.0)

    # Pointwise 1x1 conv as a single MXU matmul: bf16 operands, f32 accumulation.
    dw2 = dw.reshape(th * wdim, dw.shape[-1]).astype(pw_w_ref.dtype)
    pw = jnp.dot(dw2, pw_w_ref[...], preferred_element_type=jnp.float32)
    pw = jnp.maximum(pw + pw_b_ref[0], 0.0)

    out_ref[0] = pw.reshape(th, wdim, out_ref.shape[-1]).astype(out_ref.dtype)


def mobilev1_block_pallas(x_nchw, params, stride=1):
    if stride != 1:
        # TODO(synk): stride > 1 needs strided decimation of the depthwise output.
        raise NotImplementedError("only stride=1 supported")

    N, Cin, H, W = x_nchw.shape
    Cout = params["pw_w"].shape[1]
    Cp = _round_up(Cin, _LANE)     # lane-dense input channels
    Cpo = _round_up(Cout, _LANE)   # lane-dense output channels
    TH = _pick_strip_rows(H)
    n_strips = H // TH

    # NCHW -> NHWC + zero-pad channels to a multiple of 128 (mathematically inert;
    # transpose + channel-pad fuse into a single XLA copy).  No spatial padding.
    x = jnp.transpose(x_nchw, (0, 2, 3, 1)).astype(jnp.float32)
    if Cp != Cin:
        x = jnp.pad(x, ((0, 0), (0, 0), (0, 0), (0, Cp - Cin)))

    # Fold BN scales into the conv weights; kernel only applies bias + ReLU.
    dw_w = (params["dw_w"] * params["dw_scale"][None, None, :]).astype(jnp.float32)
    dw_b = params["dw_bias"].astype(jnp.float32)
    pw_w = (params["pw_w"] * params["pw_scale"][None, :]).astype(jnp.float32)
    pw_b = params["pw_bias"].astype(jnp.float32)

    dw_w = jnp.pad(dw_w, ((0, 0), (0, 0), (0, Cp - Cin)))                    # (3,3,Cp)
    dw_b = jnp.pad(dw_b, (0, Cp - Cin)).reshape(1, Cp)                       # (1,Cp)
    pw_w = jnp.pad(pw_w, ((0, Cp - Cin), (0, Cpo - Cout))).astype(jnp.bfloat16)
    pw_b = jnp.pad(pw_b, (0, Cpo - Cout)).reshape(1, Cpo)                    # (1,Cpo)

    # VMEM budget for the chosen strip size (double-buffered in/out + weights +
    # in-kernel intermediates), capped for v7x's smaller VMEM.
    core_bytes = TH * W * Cp * 4
    out_bytes = TH * W * Cpo * 4
    halo_bytes = W * Cp * 4
    w_bytes = 9 * Cp * 4 + Cp * 4 + Cp * Cpo * 2 + Cpo * 4
    vmem_est = (2 * (core_bytes + out_bytes + 2 * halo_bytes) + w_bytes
                + 8 * core_bytes + 4 * out_bytes)
    vmem_limit = int(min(64 * 1024 * 1024, max(32 * 1024 * 1024, vmem_est)))

    cost = pl.CostEstimate(
        flops=2 * N * H * W * Cp * (9 + Cpo),
        transcendentals=0,
        bytes_accessed=N * H * W * (Cp + Cpo) * 4 + w_bytes,
    )

    kernel = functools.partial(_mobilev1_kernel, th=TH, wdim=W)

    out_nhwc = pl.pallas_call(
        kernel,
        out_shape=jax.ShapeDtypeStruct((N, H, W, Cpo), jnp.float32),
        grid=(N, n_strips),
        in_specs=[
            # Top halo row, core strip, bottom halo row: three views of the same array.
            pl.BlockSpec((1, 1, W, Cp),
                         lambda n, s: (n, jnp.maximum(s * TH - 1, 0), 0, 0)),
            pl.BlockSpec((1, TH, W, Cp), lambda n, s: (n, s, 0, 0)),
            pl.BlockSpec((1, 1, W, Cp),
                         lambda n, s: (n, jnp.minimum((s + 1) * TH, H - 1), 0, 0)),
            pl.BlockSpec((3, 3, Cp), lambda n, s: (0, 0, 0)),
            pl.BlockSpec((1, Cp), lambda n, s: (0, 0)),
            pl.BlockSpec((Cp, Cpo), lambda n, s: (0, 0)),
            pl.BlockSpec((1, Cpo), lambda n, s: (0, 0)),
        ],
        out_specs=pl.BlockSpec((1, TH, W, Cpo), lambda n, s: (n, s, 0, 0)),
        compiler_params=pltpu.CompilerParams(
            dimension_semantics=("parallel", "parallel"),
            vmem_limit_bytes=vmem_limit),
        cost_estimate=cost,
    )(x, x, x, dw_w, dw_b, pw_w, pw_b)

    out = out_nhwc[..., :Cout]                      # drop padded output channels
    return jnp.transpose(out, (0, 3, 1, 2))         # back to NCHW


def make_params(key, in_planes, out_planes):
    """Deterministic synthetic parameters (conv weights + folded eval-mode BN)."""
    ks = jax.random.split(key, 4)
    eps = 1e-5

    # depthwise conv weight, PyTorch shape (Cin, 1, 3, 3) -> (3, 3, Cin)
    dw_w_t = jax.random.normal(ks[0], (in_planes, 1, 3, 3), jnp.float32) * 0.2
    dw_w = jnp.transpose(dw_w_t[:, 0], (1, 2, 0))
    dw_gamma = 1.0 + 0.1 * jnp.arange(in_planes, dtype=jnp.float32)
    dw_beta = 0.05 * jnp.arange(in_planes, dtype=jnp.float32)
    dw_mean = 0.01 * jnp.arange(in_planes, dtype=jnp.float32)
    dw_var = 1.0 + 0.02 * jnp.arange(in_planes, dtype=jnp.float32)
    dw_scale = dw_gamma / jnp.sqrt(dw_var + eps)
    dw_bias = dw_beta - dw_mean * dw_scale

    # pointwise conv weight, PyTorch shape (Cout, Cin, 1, 1) -> (Cin, Cout)
    pw_w_t = jax.random.normal(ks[1], (out_planes, in_planes, 1, 1), jnp.float32) * 0.2
    pw_w = jnp.transpose(pw_w_t[:, :, 0, 0], (1, 0))
    pw_gamma = 1.0 + 0.05 * jnp.arange(out_planes, dtype=jnp.float32)
    pw_beta = -0.02 * jnp.arange(out_planes, dtype=jnp.float32)
    pw_mean = 0.03 * jnp.arange(out_planes, dtype=jnp.float32)
    pw_var = 1.0 + 0.01 * jnp.arange(out_planes, dtype=jnp.float32)
    pw_scale = pw_gamma / jnp.sqrt(pw_var + eps)
    pw_bias = pw_beta - pw_mean * pw_scale

    return {
        "dw_w": dw_w, "dw_scale": dw_scale, "dw_bias": dw_bias,
        "dw_w_torch": dw_w_t, "pw_w_torch": pw_w_t,
        "pw_w": pw_w, "pw_scale": pw_scale, "pw_bias": pw_bias,
    }


def mobilev1_block_reference(x_nchw, params):
    """Pure-JAX NCHW reference matching PyTorch conv/bn(eval)/relu semantics (f32)."""
    Cin = x_nchw.shape[1]
    dn = lax.conv_dimension_numbers(x_nchw.shape, params["dw_w_torch"].shape,
                                    ("NCHW", "OIHW", "NCHW"))
    dw = lax.conv_general_dilated(x_nchw, params["dw_w_torch"],
                                  window_strides=(1, 1), padding=((1, 1), (1, 1)),
                                  dimension_numbers=dn, feature_group_count=Cin)
    dw = dw * params["dw_scale"][None, :, None, None] + params["dw_bias"][None, :, None, None]
    dw = jnp.maximum(dw, 0.0)

    dn2 = lax.conv_dimension_numbers(dw.shape, params["pw_w_torch"].shape,
                                     ("NCHW", "OIHW", "NCHW"))
    pw = lax.conv_general_dilated(dw, params["pw_w_torch"],
                                  window_strides=(1, 1), padding=((0, 0), (0, 0)),
                                  dimension_numbers=dn2)
    pw = pw * params["pw_scale"][None, :, None, None] + params["pw_bias"][None, :, None, None]
    return jnp.maximum(pw, 0.0)


if __name__ == "__main__":
    key = jax.random.PRNGKey(0)
    k_x, k_p = jax.random.split(key)

    N, Cin, Cout, H, W = 2, 4, 8, 16, 16
    x = jax.random.normal(k_x, (N, Cin, H, W), jnp.float32)
    params = make_params(k_p, Cin, Cout)

    out = jax.block_until_ready(mobilev1_block_pallas(x, params, stride=1))
    ref = jax.block_until_ready(mobilev1_block_reference(x, params))

    assert out.shape == (N, Cout, H, W), out.shape
    # Pointwise matmul uses bf16 MXU operands (f32 accumulation), so compare to the
    # f32 reference with a bf16-appropriate tolerance.
    np.testing.assert_allclose(np.asarray(out), np.asarray(ref), rtol=5e-2, atol=5e-2)

    print("KERNEL_OK")
</pallas_src>

<mosaic_0001>
module attributes {stable_mosaic.version = 11 : i64} {
  func.func @_mobilev1_kernel(%arg0: i32, %arg1: i32, %arg2: memref<1x1x16x128xf32, #tpu.memory_space<vmem>>, %arg3: memref<1x8x16x128xf32, #tpu.memory_space<vmem>>, %arg4: memref<1x1x16x128xf32, #tpu.memory_space<vmem>>, %arg5: memref<3x3x128xf32, #tpu.memory_space<vmem>>, %arg6: memref<1x128xf32, #tpu.memory_space<vmem>>, %arg7: memref<128x128xbf16, #tpu.memory_space<vmem>>, %arg8: memref<1x128xf32, #tpu.memory_space<vmem>>, %arg9: memref<1x8x16x128xf32, #tpu.memory_space<vmem>>) attributes {dimension_semantics = [#tpu.dimension_semantics<parallel>, #tpu.dimension_semantics<parallel>], iteration_bounds = array<i64: 2, 2>, scalar_prefetch = 0 : i64, scratch_operands = 0 : i64, tpu.core_type = #tpu.core_type<tc>, window_params = [{transform_indices = @transform_0, window_bounds = array<i64: 1, 1, 16, 128>}, {transform_indices = @transform_1, window_bounds = array<i64: 1, 8, 16, 128>}, {transform_indices = @transform_2, window_bounds = array<i64: 1, 1, 16, 128>}, {pipeline_mode = #tpu.pipeline_mode<synchronous>, transform_indices = @transform_3, window_bounds = array<i64: 3, 3, 128>}, {pipeline_mode = #tpu.pipeline_mode<synchronous>, transform_indices = @transform_4, window_bounds = array<i64: 1, 128>}, {pipeline_mode = #tpu.pipeline_mode<synchronous>, transform_indices = @transform_5, window_bounds = array<i64: 128, 128>}, {pipeline_mode = #tpu.pipeline_mode<synchronous>, transform_indices = @transform_6, window_bounds = array<i64: 1, 128>}, {transform_indices = @transform_7, window_bounds = array<i64: 1, 8, 16, 128>}]} {
    %c0 = arith.constant 0 : index
    %c0_0 = arith.constant 0 : index
    %c0_1 = arith.constant 0 : index
    %c0_2 = arith.constant 0 : index
    %0 = vector.load %arg3[%c0, %c0_0, %c0_1, %c0_2] : memref<1x8x16x128xf32, #tpu.memory_space<vmem>>, vector<1x8x16x128xf32>
    %1 = vector.shape_cast %0 : vector<1x8x16x128xf32> to vector<8x16x128xf32>
    %c0_3 = arith.constant 0 : index
    %c0_4 = arith.constant 0 : index
    %c0_5 = arith.constant 0 : index
    %c0_6 = arith.constant 0 : index
    %2 = vector.load %arg2[%c0_3, %c0_4, %c0_5, %c0_6] : memref<1x1x16x128xf32, #tpu.memory_space<vmem>>, vector<1x1x16x128xf32>
    %3 = vector.shape_cast %2 : vector<1x1x16x128xf32> to vector<1x16x128xf32>
    %c0_i32 = arith.constant 0 : i32
    %4 = arith.cmpi sgt, %arg1, %c0_i32 : i32
    %5 = arith.extui %4 : i1 to i32
    %6 = arith.sitofp %5 : i32 to f32
    %7 = vector.broadcast %6 : f32 to vector<1x16x128xf32>
    %8 = arith.mulf %3, %7 : vector<1x16x128xf32>
    %c0_7 = arith.constant 0 : index
    %c0_8 = arith.constant 0 : index
    %c0_9 = arith.constant 0 : index
    %c0_10 = arith.constant 0 : index
    %9 = vector.load %arg4[%c0_7, %c0_8, %c0_9, %c0_10] : memref<1x1x16x128xf32, #tpu.memory_space<vmem>>, vector<1x1x16x128xf32>
    %10 = vector.shape_cast %9 : vector<1x1x16x128xf32> to vector<1x16x128xf32>
    %c1_i32 = arith.constant 1 : i32
    %11 = arith.cmpi slt, %arg1, %c1_i32 : i32
    %12 = arith.extui %11 : i1 to i32
    %13 = arith.sitofp %12 : i32 to f32
    %14 = vector.broadcast %13 : f32 to vector<1x16x128xf32>
    %15 = arith.mulf %10, %14 : vector<1x16x128xf32>
    %16 = tpu.concatenate %8, %1, %15 in 0 : vector<1x16x128xf32>, vector<8x16x128xf32>, vector<1x16x128xf32> -> vector<10x16x128xf32>
    %17 = vector.extract_strided_slice %16 {offsets = [0, 0, 0], sizes = [8, 16, 128], strides = [1, 1, 1]} : vector<10x16x128xf32> to vector<8x16x128xf32>
    %c0_11 = arith.constant 0 : index
    %c0_12 = arith.constant 0 : index
    %c0_13 = arith.constant 0 : index
    %18 = vector.load %arg5[%c0_11, %c0_12, %c0_13] : memref<3x3x128xf32, #tpu.memory_space<vmem>>, vector<1x1x128xf32>
    %19 = vector.shape_cast %18 : vector<1x1x128xf32> to vector<128xf32>
    %20 = vector.shape_cast %19 : vector<128xf32> to vector<1x1x128xf32>
    %21 = vector.broadcast %20 : vector<1x1x128xf32> to vector<8x16x128xf32>
    %22 = arith.mulf %17, %21 : vector<8x16x128xf32>
    %23 = vector.extract_strided_slice %16 {offsets = [1, 0, 0], sizes = [8, 16, 128], strides = [1, 1, 1]} : vector<10x16x128xf32> to vector<8x16x128xf32>
    %c1 = arith.constant 1 : index
    %c0_14 = arith.constant 0 : index
    %c0_15 = arith.constant 0 : index
    %24 = vector.load %arg5[%c1, %c0_14, %c0_15] : memref<3x3x128xf32, #tpu.memory_space<vmem>>, vector<1x1x128xf32>
    %25 = vector.shape_cast %24 : vector<1x1x128xf32> to vector<128xf32>
    %26 = vector.shape_cast %25 : vector<128xf32> to vector<1x1x128xf32>
    %27 = vector.broadcast %26 : vector<1x1x128xf32> to vector<8x16x128xf32>
    %28 = arith.mulf %23, %27 : vector<8x16x128xf32>
    %29 = arith.addf %22, %28 : vector<8x16x128xf32>
    %30 = vector.extract_strided_slice %16 {offsets = [2, 0, 0], sizes = [8, 16, 128], strides = [1, 1, 1]} : vector<10x16x128xf32> to vector<8x16x128xf32>
    %c2 = arith.constant 2 : index
    %c0_16 = arith.constant 0 : index
    %c0_17 = arith.constant 0 : index
    %31 = vector.load %arg5[%c2, %c0_16, %c0_17] : memref<3x3x128xf32, #tpu.memory_space<vmem>>, vector<1x1x128xf32>
    %32 = vector.shape_cast %31 : vector<1x1x128xf32> to vector<128xf32>
    %33 = vector.shape_cast %32 : vector<128xf32> to vector<1x1x128xf32>
    %34 = vector.broadcast %33 : vector<1x1x128xf32> to vector<8x16x128xf32>
    %35 = arith.mulf %30, %34 : vector<8x16x128xf32>
    %36 = arith.addf %29, %35 : vector<8x16x128xf32>
    %37 = vector.extract_strided_slice %16 {offsets = [0, 0, 0], sizes = [8, 16, 128], strides = [1, 1, 1]} : vector<10x16x128xf32> to vector<8x16x128xf32>
    %c0_18 = arith.constant 0 : index
    %c1_19 = arith.constant 1 : index
    %c0_20 = arith.constant 0 : index
    %38 = vector.load %arg5[%c0_18, %c1_19, %c0_20] : memref<3x3x128xf32, #tpu.memory_space<vmem>>, vector<1x1x128xf32>
    %39 = vector.shape_cast %38 : vector<1x1x128xf32> to vector<128xf32>
    %40 = vector.shape_cast %39 : vector<128xf32> to vector<1x1x128xf32>
    %41 = vector.broadcast %40 : vector<1x1x128xf32> to vector<8x16x128xf32>
    %42 = arith.mulf %37, %41 : vector<8x16x128xf32>
    %43 = vector.extract_strided_slice %16 {offsets = [1, 0, 0], sizes = [8, 16, 128], strides = [1, 1, 1]} : vector<10x16x128xf32> to vector<8x16x128xf32>
    %c1_21 = arith.constant 1 : index
    %c1_22 = arith.constant 1 : index
    %c0_23 = arith.constant 0 : index
    %44 = vector.load %arg5[%c1_21, %c1_22, %c0_23] : memref<3x3x128xf32, #tpu.memory_space<vmem>>, vector<1x1x128xf32>
    %45 = vector.shape_cast %44 : vector<1x1x128xf32> to vector<128xf32>
    %46 = vector.shape_cast %45 : vector<128xf32> to vector<1x1x128xf32>
    %47 = vector.broadcast %46 : vector<1x1x128xf32> to vector<8x16x128xf32>
    %48 = arith.mulf %43, %47 : vector<8x16x128xf32>
    %49 = arith.addf %42, %48 : vector<8x16x128xf32>
    %50 = vector.extract_strided_slice %16 {offsets = [2, 0, 0], sizes = [8, 16, 128], strides = [1, 1, 1]} : vector<10x16x128xf32> to vector<8x16x128xf32>
    %c2_24 = arith.constant 2 : index
    %c1_25 = arith.constant 1 : index
    %c0_26 = arith.constant 0 : index
    %51 = vector.load %arg5[%c2_24, %c1_25, %c0_26] : memref<3x3x128xf32, #tpu.memory_space<vmem>>, vector<1x1x128xf32>
    %52 = vector.shape_cast %51 : vector<1x1x128xf32> to vector<128xf32>
    %53 = vector.shape_cast %52 : vector<128xf32> to vector<1x1x128xf32>
    %54 = vector.broadcast %53 : vector<1x1x128xf32> to vector<8x16x128xf32>
    %55 = arith.mulf %50, %54 : vector<8x16x128xf32>
    %56 = arith.addf %49, %55 : vector<8x16x128xf32>
    %57 = vector.extract_strided_slice %16 {offsets = [0, 0, 0], sizes = [8, 16, 128], strides = [1, 1, 1]} : vector<10x16x128xf32> to vector<8x16x128xf32>
    %c0_27 = arith.constant 0 : index
    %c2_28 = arith.constant 2 : index
    %c0_29 = arith.constant 0 : index
    %58 = vector.load %arg5[%c0_27, %c2_28, %c0_29] : memref<3x3x128xf32, #tpu.memory_space<vmem>>, vector<1x1x128xf32>
    %59 = vector.shape_cast %58 : vector<1x1x128xf32> to vector<128xf32>
    %60 = vector.shape_cast %59 : vector<128xf32> to vector<1x1x128xf32>
    %61 = vector.broadcast %60 : vector<1x1x128xf32> to vector<8x16x128xf32>
    %62 = arith.mulf %57, %61 : vector<8x16x128xf32>
    %63 = vector.extract_strided_slice %16 {offsets = [1, 0, 0], sizes = [8, 16, 128], strides = [1, 1, 1]} : vector<10x16x128xf32> to vector<8x16x128xf32>
    %c1_30 = arith.constant 1 : index
    %c2_31 = arith.constant 2 : index
    %c0_32 = arith.constant 0 : index
    %64 = vector.load %arg5[%c1_30, %c2_31, %c0_32] : memref<3x3x128xf32, #tpu.memory_space<vmem>>, vector<1x1x128xf32>
    %65 = vector.shape_cast %64 : vector<1x1x128xf32> to vector<128xf32>
    %66 = vector.shape_cast %65 : vector<128xf32> to vector<1x1x128xf32>
    %67 = vector.broadcast %66 : vector<1x1x128xf32> to vector<8x16x128xf32>
    %68 = arith.mulf %63, %67 : vector<8x16x128xf32>
    %69 = arith.addf %62, %68 : vector<8x16x128xf32>
    %70 = vector.extract_strided_slice %16 {offsets = [2, 0, 0], sizes = [8, 16, 128], strides = [1, 1, 1]} : vector<10x16x128xf32> to vector<8x16x128xf32>
    %c2_33 = arith.constant 2 : index
    %c2_34 = arith.constant 2 : index
    %c0_35 = arith.constant 0 : index
    %71 = vector.load %arg5[%c2_33, %c2_34, %c0_35] : memref<3x3x128xf32, #tpu.memory_space<vmem>>, vector<1x1x128xf32>
    %72 = vector.shape_cast %71 : vector<1x1x128xf32> to vector<128xf32>
    %73 = vector.shape_cast %72 : vector<128xf32> to vector<1x1x128xf32>
    %74 = vector.broadcast %73 : vector<1x1x128xf32> to vector<8x16x128xf32>
    %75 = arith.mulf %70, %74 : vector<8x16x128xf32>
    %76 = arith.addf %69, %75 : vector<8x16x128xf32>
    %cst = arith.constant 0.000000e+00 : f32
    %77 = vector.broadcast %cst : f32 to vector<8x1x128xf32>
    %78 = vector.extract_strided_slice %36 {offsets = [0, 0, 0], sizes = [8, 15, 128], strides = [1, 1, 1]} : vector<8x16x128xf32> to vector<8x15x128xf32>
    %79 = tpu.concatenate %77, %78 in 1 : vector<8x1x128xf32>, vector<8x15x128xf32> -> vector<8x16x128xf32>
    %80 = vector.extract_strided_slice %76 {offsets = [0, 1, 0], sizes = [8, 15, 128], strides = [1, 1, 1]} : vector<8x16x128xf32> to vector<8x15x128xf32>
    %81 = tpu.concatenate %80, %77 in 1 : vector<8x15x128xf32>, vector<8x1x128xf32> -> vector<8x16x128xf32>
    %82 = arith.addf %79, %56 : vector<8x16x128xf32>
    %83 = arith.addf %82, %81 : vector<8x16x128xf32>
    %c0_36 = arith.constant 0 : index
    %c0_37 = arith.constant 0 : index
    %84 = vector.load %arg6[%c0_36, %c0_37] : memref<1x128xf32, #tpu.memory_space<vmem>>, vector<1x128xf32>
    %85 = vector.shape_cast %84 : vector<1x128xf32> to vector<128xf32>
    %86 = vector.shape_cast %85 : vector<128xf32> to vector<1x1x128xf32>
    %87 = vector.broadcast %86 : vector<1x1x128xf32> to vector<8x16x128xf32>
    %88 = arith.addf %83, %87 : vector<8x16x128xf32>
    %cst_38 = arith.constant 0.000000e+00 : f32
    %89 = vector.broadcast %cst_38 : f32 to vector<8x16x128xf32>
    %90 = arith.maximumf %88, %89 : vector<8x16x128xf32>
    %91 = vector.shape_cast %90 : vector<8x16x128xf32> to vector<128x128xf32>
    %92 = arith.truncf %91 : vector<128x128xf32> to vector<128x128xbf16>
    %c0_39 = arith.constant 0 : index
    %c0_40 = arith.constant 0 : index
    %93 = vector.load %arg7[%c0_39, %c0_40] : memref<128x128xbf16, #tpu.memory_space<vmem>>, vector<128x128xbf16>
    %cst_41 = arith.constant dense<0.000000e+00> : vector<128x128xf32>
    %94 = tpu.matmul %92, %93, %cst_41 {dimension_numbers = #tpu.dot_dimension_numbers<[1], [0], [0], [1], [0, 0, 1, 1], [], []>} : vector<128x128xbf16>, vector<128x128xbf16>, vector<128x128xf32> -> vector<128x128xf32>
    %c0_42 = arith.constant 0 : index
    %c0_43 = arith.constant 0 : index
    %95 = vector.load %arg8[%c0_42, %c0_43] : memref<1x128xf32, #tpu.memory_space<vmem>>, vector<1x128xf32>
    %96 = vector.shape_cast %95 : vector<1x128xf32> to vector<128xf32>
    %97 = vector.shape_cast %96 : vector<128xf32> to vector<1x128xf32>
    %98 = vector.broadcast %97 : vector<1x128xf32> to vector<128x128xf32>
    %99 = arith.addf %94, %98 : vector<128x128xf32>
    %cst_44 = arith.constant 0.000000e+00 : f32
    %100 = vector.broadcast %cst_44 : f32 to vector<128x128xf32>
    %101 = arith.maximumf %99, %100 : vector<128x128xf32>
    %102 = vector.shape_cast %101 : vector<128x128xf32> to vector<8x16x128xf32>
    %c0_45 = arith.constant 0 : index
    %c0_46 = arith.constant 0 : index
    %c0_47 = arith.constant 0 : index
    %c0_48 = arith.constant 0 : index
    %103 = vector.load %arg9[%c0_45, %c0_46, %c0_47, %c0_48] : memref<1x8x16x128xf32, #tpu.memory_space<vmem>>, vector<1x8x16x128xf32>
    %104 = vector.shape_cast %103 : vector<1x8x16x128xf32> to vector<8x16x128xf32>
    %105 = vector.shape_cast %102 : vector<8x16x128xf32> to vector<1x8x16x128xf32>
    tpu.vector_store %arg9[%c0_45, %c0_46, %c0_47, %c0_48], %105 {strides = array<i32>} : memref<1x8x16x128xf32, #tpu.memory_space<vmem>>, vector<1x8x16x128xf32>,
    return
  }
  func.func @transform_0(%arg0: i32, %arg1: i32) -> (i32, i32, i32, i32) {
    %c8_i32 = arith.constant 8 : i32
    %0 = arith.muli %arg1, %c8_i32 : i32
    %c1_i32 = arith.constant 1 : i32
    %1 = arith.subi %0, %c1_i32 : i32
    %c0_i32 = arith.constant 0 : i32
    %2 = arith.maxsi %1, %c0_i32 : i32
    %c0_i32_0 = arith.constant 0 : i32
    %c0_i32_1 = arith.constant 0 : i32
    %c0_i32_2 = arith.constant 0 : i32
    return %arg0, %2, %c0_i32_0, %c0_i32_1 : i32, i32, i32, i32
  }
  func.func @transform_1(%arg0: i32, %arg1: i32) -> (i32, i32, i32, i32) {
    %c0_i32 = arith.constant 0 : i32
    %c0_i32_0 = arith.constant 0 : i32
    %c0_i32_1 = arith.constant 0 : i32
    return %arg0, %arg1, %c0_i32, %c0_i32_0 : i32, i32, i32, i32
  }
  func.func @transform_2(%arg0: i32, %arg1: i32) -> (i32, i32, i32, i32) {
    %c1_i32 = arith.constant 1 : i32
    %0 = arith.addi %arg1, %c1_i32 : i32
    %c8_i32 = arith.constant 8 : i32
    %1 = arith.muli %0, %c8_i32 : i32
    %c15_i32 = arith.constant 15 : i32
    %2 = arith.minsi %1, %c15_i32 : i32
    %c0_i32 = arith.constant 0 : i32
    %c0_i32_0 = arith.constant 0 : i32
    %c0_i32_1 = arith.constant 0 : i32
    return %arg0, %2, %c0_i32, %c0_i32_0 : i32, i32, i32, i32
  }
  func.func @transform_3(%arg0: i32, %arg1: i32) -> (i32, i32, i32) {
    %c0_i32 = arith.constant 0 : i32
    %c0_i32_0 = arith.constant 0 : i32
    %c0_i32_1 = arith.constant 0 : i32
    %c0_i32_2 = arith.constant 0 : i32
    return %c0_i32, %c0_i32_0, %c0_i32_1 : i32, i32, i32
  }
  func.func @transform_4(%arg0: i32, %arg1: i32) -> (i32, i32) {
    %c0_i32 = arith.constant 0 : i32
    %c0_i32_0 = arith.constant 0 : i32
    %c0_i32_1 = arith.constant 0 : i32
    return %c0_i32, %c0_i32_0 : i32, i32
  }
  func.func @transform_5(%arg0: i32, %arg1: i32) -> (i32, i32) {
    %c0_i32 = arith.constant 0 : i32
    %c0_i32_0 = arith.constant 0 : i32
    %c0_i32_1 = arith.constant 0 : i32
    return %c0_i32, %c0_i32_0 : i32, i32
  }
  func.func @transform_6(%arg0: i32, %arg1: i32) -> (i32, i32) {
    %c0_i32 = arith.constant 0 : i32
    %c0_i32_0 = arith.constant 0 : i32
    %c0_i32_1 = arith.constant 0 : i32
    return %c0_i32, %c0_i32_0 : i32, i32
  }
  func.func @transform_7(%arg0: i32, %arg1: i32) -> (i32, i32, i32, i32) {
    %c0_i32 = arith.constant 0 : i32
    %c0_i32_0 = arith.constant 0 : i32
    %c0_i32_1 = arith.constant 0 : i32
    return %arg0, %arg1, %c0_i32, %c0_i32_0 : i32, i32, i32, i32
  }
}

</mosaic_0001>

<llo_original>
// kernel: tpu_custom_call.1
$region0: #{tpu_custom_call.1}
  #allocation0 [shape = 'u32[]', space=smem, size = 0x4, offset = 0x4, fixed_abs, tag = 'smem constant byte address 0x4 - core index']
  #allocation1 [shape = 'u32[144,128]{1,0:T(1,128)}', space=vmem, size = 0x12000, scoped, tag = 'internal scratch']
  %s0 = inlined_call_operand.hbm [shape: f32[2,16,16,128], index: 0, kind: input, shape index: {}]
  %s1 = inlined_call_operand.hbm [shape: f32[2,16,16,128], index: 1, kind: input, shape index: {}]
  %s2 = inlined_call_operand.hbm [shape: f32[2,16,16,128], index: 2, kind: input, shape index: {}]
  %s3 = inlined_call_operand.hbm [shape: f32[3,3,128], index: 3, kind: input, shape index: {}]
  %s4 = inlined_call_operand.vmem [shape: f32[1,128], index: 4, kind: input, shape index: {}]
  %s5 = inlined_call_operand.hbm [shape: bf16[128,128], index: 5, kind: input, shape index: {}]
  %s6 = inlined_call_operand.vmem [shape: f32[1,128], index: 6, kind: input, shape index: {}]
  %s7 = inlined_call_operand.hbm [shape: f32[2,16,16,128], index: 7, kind: output, shape index: {}]
  %s8 = sld [smem:[#allocation0]]
  $region81: #{tpu_custom_call.1} parent=0
    _
  %s10 = ssub.s32 1, %s8
  %s11 = scalar_select 0, %s10, %s8
  $region1: #{tpu_custom_call.1} parent=0
    #allocation2 [shape = 'u8[16384]{0}', space=vmem, size = 0x4000, scoped, tag = 'input window, operand 0']
    #allocation3 [shape = 's32[2]{0}', space=sflag, size = 0x8, scoped, tag = 'scoped memory for tpu_custom_call.1']
    #allocation4 [shape = 's32[2]{0}', space=sflag, size = 0x8, scoped, tag = 'scoped memory for tpu_custom_call.1']
    #allocation5 [shape = 'u8[131072]{0}', space=vmem, size = 0x20000, scoped, tag = 'input window, operand 1']
    #allocation6 [shape = 's32[2]{0}', space=sflag, size = 0x8, scoped, tag = 'scoped memory for tpu_custom_call.1']
    #allocation7 [shape = 'u8[16384]{0}', space=vmem, size = 0x4000, scoped, tag = 'input window, operand 2']
    #allocation8 [shape = 'u8[6144]{0}', space=vmem, size = 0x1800, scoped, tag = 'input window, operand 3, single buffered']
    #allocation9 [shape = 's32[1]{0}', space=sflag, size = 0x4, scoped, tag = 'scoped memory for tpu_custom_call.1']
    #allocation10 [shape = 'u8[32768]{0}', space=vmem, size = 0x8000, scoped, tag = 'input window, operand 5, single buffered']
    #allocation11 [shape = 'u8[131072]{0}', space=vmem, size = 0x20000, scoped, tag = 'output window, operand 0']
    %12 = vsyncpa [#allocation3], 0
    %s13 = scalar_lea.sflag [#allocation3], 1
    %14 = vsyncpa %s13, 0
    %15 = vsyncpa [#allocation6], 0
    %s16 = scalar_lea.sflag [#allocation6], 1
    %17 = vsyncpa %s16, 0
    %18 = vsyncpa [#allocation9], 0
    %19 = vsyncpa [#allocation4], 0
    %s20 = scalar_lea.sflag [#allocation4], 1
    %21 = vsyncpa %s20, 0
    loop: start=0, step=1, limit=6
    $region2: #{tpu_custom_call.1} parent=1 // loop_pre_header
      _
    $region3: #{tpu_custom_call.1} parent=1 // loop_header
      %s23 = sphi 0, %s27
      %p24 = scmp.ge.s32.totalorder %s23, 6
      %s30 = sphi 0, %s42
      %s31 = sphi 0, %s38
      %s32 = sphi 0, %s30
      %s33 = sphi 0, %s31
      %s34 = sphi 0, %s32
      %s35 = sphi 0, %s33
      %s55 = sphi 0, %s57
      %s58 = sphi 0, %s55
      %s59 = sphi 0, %s58
      %s75 = sphi 0, %s59
      %s83 = sphi 0, %s85
      %s86 = sphi 0, %s83
      %s87 = sphi 0, %s86
      %s103 = sphi 0, %s87
      %s119 = sphi 0, %s121
      %s122 = sphi 0, %s119
      %s123 = sphi 0, %s122
      %s139 = sphi 0, %s123
      %s143 = sphi 0, %s143
      %s145 = sphi 0, %s143
      %s146 = sphi 0, %s145
      %s160 = sphi 0, %s146
      %s164 = sphi 0, %s164
      %s166 = sphi 0, %s164
      %s167 = sphi 0, %s166
      %s181 = sphi 0, %s167
      %s185 = sphi 0, %s185
      %s187 = sphi 0, %s185
      %s188 = sphi 0, %s187
      %s202 = sphi 0, %s188
      %s206 = sphi 0, %s206
      %s208 = sphi 0, %s206
      %s209 = sphi 0, %s208
      %s223 = sphi 0, %s209
      %s231 = sphi 0, %s233
      %s234 = sphi 0, %s231
      %s235 = sphi 0, %s234
      %s251 = sphi 0, %s235
    $region4: #{tpu_custom_call.1} parent=1 // loop_header_branch
      %26 = sbr.rel (%p24) target = $region8
    $region5: #{tpu_custom_call.1} parent=1 // loop_body
      %s28 = ssub.s32 %s23, 1
      %s29 = ssub.s32 %s23, 2
      %s36 = sadd.s32 1, %s31
      %p37 = scmp.ge.s32.totalorder %s36, 2
      %s38 = scalar_select %p37, 0, %s36
      %s39 = sadd.s32 1, %s30
      %s40 = scalar_select %p37, %s39, %s30
      %p41 = scmp.ge.s32.totalorder %s40, 2
      %s42 = scalar_select %p41, 0, %s40
      %s43 = smul.u32 %s31, 8
      %s44 = ssub.s32 %s43, 1
      %p45 = scmp.gt.s32.totalorder %s44, 0
      %s46 = scalar_select %p45, %s44, 0
      %s47 = smul.u32 %s38, 8
      %s48 = ssub.s32 %s47, 1
      %p49 = scmp.gt.s32.totalorder %s48, 0
      %s50 = scalar_select %p49, %s48, 0
      %s51 = ssub.s32 %s30, %s42
      %s52 = ssub.s32 %s46, %s50
      %s53 = sor.u32 %s51, %s52
      %p54 = scmp.eq.s32.totalorder %s53, 0
      %s56 = sadd.s32 %s55, 1
      %s57 = scalar_select %p54, %s55, %s56
      %p60 = pneg %p54
      %p61 = scmp.eq.s32.totalorder %s23, 3
      %p62 = por %p60, %p61
      %p63 = scmp.ne.s32.totalorder %s55, %s58
      %p64 = scmp.eq.s32.totalorder %s23, 0
      %p65 = por %p63, %p64
      %p66 = scmp.ne.s32.totalorder %s55, %s58
      %p67 = scmp.eq.s32.totalorder %s28, 3
      %p68 = por %p66, %p67
      %p69 = scmp.ne.s32.totalorder %s58, %s59
      %p70 = scmp.eq.s32.totalorder %s28, 0
      %p71 = por %p69, %p70
      %p72 = scmp.ne.s32.totalorder %s58, %s59
      %p73 = scmp.eq.s32.totalorder %s29, 3
      %p74 = por %p72, %p73
      %p76 = scmp.ne.s32.totalorder %s59, %s75
      %p77 = scmp.eq.s32.totalorder %s29, 0
      %p78 = por %p76, %p77
      %s79 = ssub.s32 %s30, %s42
      %s80 = ssub.s32 %s31, %s38
      %s81 = sor.u32 %s79, %s80
      %p82 = scmp.eq.s32.totalorder %s81, 0
      %s84 = sadd.s32 %s83, 1
      %s85 = scalar_select %p82, %s83, %s84
      %p88 = pneg %p82
      %p89 = scmp.eq.s32.totalorder %s23, 3
      %p90 = por %p88, %p89
      %p91 = scmp.ne.s32.totalorder %s83, %s86
      %p92 = scmp.eq.s32.totalorder %s23, 0
      %p93 = por %p91, %p92
      %p94 = scmp.ne.s32.totalorder %s83, %s86
      %p95 = scmp.eq.s32.totalorder %s28, 3
      %p96 = por %p94, %p95
      %p97 = scmp.ne.s32.totalorder %s86, %s87
      %p98 = scmp.eq.s32.totalorder %s28, 0
      %p99 = por %p97, %p98
      %p100 = scmp.ne.s32.totalorder %s86, %s87
      %p101 = scmp.eq.s32.totalorder %s29, 3
      %p102 = por %p100, %p101
      %p104 = scmp.ne.s32.totalorder %s87, %s103
      %p105 = scmp.eq.s32.totalorder %s29, 0
      %p106 = por %p104, %p105
      %s107 = sadd.s32 %s31, 1
      %s108 = smul.u32 %s107, 8
      %p109 = scmp.lt.s32.totalorder %s108, 15
      %s110 = scalar_select %p109, %s108, 15
      %s111 = sadd.s32 %s38, 1
      %s112 = smul.u32 %s111, 8
      %p113 = scmp.lt.s32.totalorder %s112, 15
      %s114 = scalar_select %p113, %s112, 15
      %s115 = ssub.s32 %s30, %s42
      %s116 = ssub.s32 %s110, %s114
      %s117 = sor.u32 %s115, %s116
      %p118 = scmp.eq.s32.totalorder %s117, 0
      %s120 = sadd.s32 %s119, 1
      %s121 = scalar_select %p118, %s119, %s120
      %p124 = pneg %p118
      %p125 = scmp.eq.s32.totalorder %s23, 3
      %p126 = por %p124, %p125
      %p127 = scmp.ne.s32.totalorder %s119, %s122
      %p128 = scmp.eq.s32.totalorder %s23, 0
      %p129 = por %p127, %p128
      %p130 = scmp.ne.s32.totalorder %s119, %s122
      %p131 = scmp.eq.s32.totalorder %s28, 3
      %p132 = por %p130, %p131
      %p133 = scmp.ne.s32.totalorder %s122, %s123
      %p134 = scmp.eq.s32.totalorder %s28, 0
      %p135 = por %p133, %p134
      %p136 = scmp.ne.s32.totalorder %s122, %s123
      %p137 = scmp.eq.s32.totalorder %s29, 3
      %p138 = por %p136, %p137
      %p140 = scmp.ne.s32.totalorder %s123, %s139
      %p141 = scmp.eq.s32.totalorder %s29, 0
      %p142 = por %p140, %p141
      %s144 = sadd.s32 %s143, 1
      %p147 = scmp.eq.s32.totalorder %s23, 3
      %p148 = scmp.ne.s32.totalorder %s143, %s145
      %p149 = scmp.eq.s32.totalorder %s23, 0
      %p150 = por %p148, %p149
      %p151 = scmp.ne.s32.totalorder %s143, %s145
      %p152 = scmp.eq.s32.totalorder %s28, 3
      %p153 = por %p151, %p152
      %p154 = scmp.ne.s32.totalorder %s145, %s146
      %p155 = scmp.eq.s32.totalorder %s28, 0
      %p156 = por %p154, %p155
      %p157 = scmp.ne.s32.totalorder %s145, %s146
      %p158 = scmp.eq.s32.totalorder %s29, 3
      %p159 = por %p157, %p158
      %p161 = scmp.ne.s32.totalorder %s146, %s160
      %p162 = scmp.eq.s32.totalorder %s29, 0
      %p163 = por %p161, %p162
      %s165 = sadd.s32 %s164, 1
      %p168 = scmp.eq.s32.totalorder %s23, 3
      %p169 = scmp.ne.s32.totalorder %s164, %s166
      %p170 = scmp.eq.s32.totalorder %s23, 0
      %p171 = por %p169, %p170
      %p172 = scmp.ne.s32.totalorder %s164, %s166
      %p173 = scmp.eq.s32.totalorder %s28, 3
      %p174 = por %p172, %p173
      %p175 = scmp.ne.s32.totalorder %s166, %s167
      %p176 = scmp.eq.s32.totalorder %s28, 0
      %p177 = por %p175, %p176
      %p178 = scmp.ne.s32.totalorder %s166, %s167
      %p179 = scmp.eq.s32.totalorder %s29, 3
      %p180 = por %p178, %p179
      %p182 = scmp.ne.s32.totalorder %s167, %s181
      %p183 = scmp.eq.s32.totalorder %s29, 0
      %p184 = por %p182, %p183
      %s186 = sadd.s32 %s185, 1
      %p189 = scmp.eq.s32.totalorder %s23, 3
      %p190 = scmp.ne.s32.totalorder %s185, %s187
      %p191 = scmp.eq.s32.totalorder %s23, 0
      %p192 = por %p190, %p191
      %p193 = scmp.ne.s32.totalorder %s185, %s187
      %p194 = scmp.eq.s32.totalorder %s28, 3
      %p195 = por %p193, %p194
      %p196 = scmp.ne.s32.totalorder %s187, %s188
      %p197 = scmp.eq.s32.totalorder %s28, 0
      %p198 = por %p196, %p197
      %p199 = scmp.ne.s32.totalorder %s187, %s188
      %p200 = scmp.eq.s32.totalorder %s29, 3
      %p201 = por %p199, %p200
      %p203 = scmp.ne.s32.totalorder %s188, %s202
      %p204 = scmp.eq.s32.totalorder %s29, 0
      %p205 = por %p203, %p204
      %s207 = sadd.s32 %s206, 1
      %p210 = scmp.eq.s32.totalorder %s23, 3
      %p211 = scmp.ne.s32.totalorder %s206, %s208
      %p212 = scmp.eq.s32.totalorder %s23, 0
      %p213 = por %p211, %p212
      %p214 = scmp.ne.s32.totalorder %s206, %s208
      %p215 = scmp.eq.s32.totalorder %s28, 3
      %p216 = por %p214, %p215
      %p217 = scmp.ne.s32.totalorder %s208, %s209
      %p218 = scmp.eq.s32.totalorder %s28, 0
      %p219 = por %p217, %p218
      %p220 = scmp.ne.s32.totalorder %s208, %s209
      %p221 = scmp.eq.s32.totalorder %s29, 3
      %p222 = por %p220, %p221
      %p224 = scmp.ne.s32.totalorder %s209, %s223
      %p225 = scmp.eq.s32.totalorder %s29, 0
      %p226 = por %p224, %p225
      %s227 = ssub.s32 %s30, %s42
      %s228 = ssub.s32 %s31, %s38
      %s229 = sor.u32 %s227, %s228
      %p230 = scmp.eq.s32.totalorder %s229, 0
      %s232 = sadd.s32 %s231, 1
      %s233 = scalar_select %p230, %s231, %s232
      %p236 = pneg %p230
      %p237 = scmp.eq.s32.totalorder %s23, 3
      %p238 = por %p236, %p237
      %p239 = scmp.ne.s32.totalorder %s231, %s234
      %p240 = scmp.eq.s32.totalorder %s23, 0
      %p241 = por %p239, %p240
      %p242 = scmp.ne.s32.totalorder %s231, %s234
      %p243 = scmp.eq.s32.totalorder %s28, 3
      %p244 = por %p242, %p243
      %p245 = scmp.ne.s32.totalorder %s234, %s235
      %p246 = scmp.eq.s32.totalorder %s28, 0
      %p247 = por %p245, %p246
      %p248 = scmp.ne.s32.totalorder %s234, %s235
      %p249 = scmp.eq.s32.totalorder %s29, 3
      %p250 = por %p248, %p249
      %p252 = scmp.ne.s32.totalorder %s235, %s251
      %p253 = scmp.eq.s32.totalorder %s29, 0
      %p254 = por %p252, %p253
      %p255 = scmp.le.s32.totalorder 1, %s23
      %p256 = scmp.lt.s32.totalorder %s23, 5
      %p257 = pnand %p255, %p256
      %p258 = pneg %p257
      // Predicated region
      $region9: #{tpu_custom_call.1} parent=5 // pred_check
        _
      $region10: #{tpu_custom_call.1} parent=5 // pred_check_branch
        %260 = sbr.rel (%p257) target = $region12
      $region11: #{tpu_custom_call.1} parent=5 // pred_region
        %s261 = ssub.s32 %s23, 1
        // Predicated region
        $region13: #{tpu_custom_call.1} parent=11 // pred_check
          %p262 = pneg %p156
        $region14: #{tpu_custom_call.1} parent=11 // pred_check_branch
          %264 = sbr.rel (%p262) target = $region16
        $region15: #{tpu_custom_call.1} parent=11 // pred_region
          %s266 = ssub.s32 192, 192
          %267 = vsyncadd [#allocation9], %s266
          %s268 = sshll.u32 [#allocation8], 4
          %s269 = int_to_ptr.vmem [resolvable:$true] %s268
          %274 = dma.hbm_to_vmem [thread:$0]  %s3, 192, %s269, [#allocation9], 64, 64, 4
        $region16: #{tpu_custom_call.1} parent=11 // pred_fallthru
          _
        // Predicated region
        $region17: #{tpu_custom_call.1} parent=11 // pred_check
          %p275 = pneg %p177
        $region18: #{tpu_custom_call.1} parent=11 // pred_check_branch
          %277 = sbr.rel (%p275) target = $region20
        $region19: #{tpu_custom_call.1} parent=11 // pred_region
          _
        $region20: #{tpu_custom_call.1} parent=11 // pred_fallthru
          _
        // Predicated region
        $region21: #{tpu_custom_call.1} parent=11 // pred_check
          %p278 = pneg %p198
        $region22: #{tpu_custom_call.1} parent=11 // pred_check_branch
          %280 = sbr.rel (%p278) target = $region24
        $region23: #{tpu_custom_call.1} parent=11 // pred_region
          %s282 = ssub.s32 1024, 1024
          %283 = vsyncadd [#allocation9], %s282
          %s284 = sshll.u32 [#allocation10], 4
          %s285 = int_to_ptr.vmem [resolvable:$true] %s284
          %290 = dma.hbm_to_vmem [thread:$0]  %s5, 1024, %s285, [#allocation9], 64, 64, 4
        $region24: #{tpu_custom_call.1} parent=11 // pred_fallthru
          _
        // Predicated region
        $region25: #{tpu_custom_call.1} parent=11 // pred_check
          %p291 = pneg %p219
        $region26: #{tpu_custom_call.1} parent=11 // pred_check_branch
          %293 = sbr.rel (%p291) target = $region28
        $region27: #{tpu_custom_call.1} parent=11 // pred_region
          _
        $region28: #{tpu_custom_call.1} parent=11 // pred_fallthru
          _
      $region12: #{tpu_custom_call.1} parent=5 // pred_fallthru
        _
      %p294 = scmp.lt.s32.totalorder %s23, 4
      // Predicated region
      $region29: #{tpu_custom_call.1} parent=5 // pred_check
        %p295 = pneg %p294
      $region30: #{tpu_custom_call.1} parent=5 // pred_check_branch
        %297 = sbr.rel (%p295) target = $region32
      $region31: #{tpu_custom_call.1} parent=5 // pred_region
        // Predicated region
        $region33: #{tpu_custom_call.1} parent=31 // pred_check
          %p298 = pneg %p65
        $region34: #{tpu_custom_call.1} parent=31 // pred_check_branch
          %300 = sbr.rel (%p298) target = $region36
        $region35: #{tpu_custom_call.1} parent=31 // pred_region
          %s301 = sand.u32 %s55, 1
          %s302 = scalar_lea.sflag [#allocation3], %s301
          %s303 = sand.u32 %s55, 1
          %s304 = smul.addr %s303, 16
          %s305 = scalar_lea.vmem [#allocation2], %s304
          %s306 = smul.u32 %s31, 8
          %s307 = ssub.s32 %s306, 1
          %p308 = scmp.gt.s32.totalorder %s307, 0
          %s309 = scalar_select %p308, %s307, 0
          %s311 = ssub.s32 256, 256
          %312 = vsyncadd %s302, %s311
          %s313 = smul.addr %s309, 2
          %s314 = smul.addr %s30, 32
          %s315 = sadd.s32 %s313, %s314
          %s316 = smul.addr %s315, 128
          %s317 = scalar_lea.hbm %s0, %s316
          %s318 = sshll.u32 %s305, 4
          %s319 = int_to_ptr.vmem [resolvable:$true] %s318
          %324 = dma.hbm_to_vmem [thread:$0]  %s317, 256, %s319, %s302, 128, 128, 8
        $region36: #{tpu_custom_call.1} parent=31 // pred_fallthru
          _
        // Predicated region
        $region37: #{tpu_custom_call.1} parent=31 // pred_check
          %p325 = pneg %p93
        $region38: #{tpu_custom_call.1} parent=31 // pred_check_branch
          %327 = sbr.rel (%p325) target = $region40
        $region39: #{tpu_custom_call.1} parent=31 // pred_region
          %s328 = sand.u32 %s23, 1
          %s329 = scalar_lea.sflag [#allocation6], %s328
          %s330 = sand.u32 %s83, 1
          %s331 = smul.addr %s330, 128
          %s332 = scalar_lea.vmem [#allocation5], %s331
          %s333 = smul.u32 8, %s31
          %s335 = ssub.s32 2048, 2048
          %336 = vsyncadd %s329, %s335
          %s337 = smul.addr %s333, 2
          %s338 = smul.addr %s30, 32
          %s339 = sadd.s32 %s337, %s338
          %s340 = smul.addr %s339, 128
          %s341 = scalar_lea.hbm %s1, %s340
          %s342 = sshll.u32 %s332, 4
          %s343 = int_to_ptr.vmem [resolvable:$true] %s342
          %348 = dma.hbm_to_vmem [thread:$0]  %s341, 2048, %s343, %s329, 128, 128, 8
        $region40: #{tpu_custom_call.1} parent=31 // pred_fallthru
          _
        // Predicated region
        $region41: #{tpu_custom_call.1} parent=31 // pred_check
          %p349 = pneg %p129
        $region42: #{tpu_custom_call.1} parent=31 // pred_check_branch
          %351 = sbr.rel (%p349) target = $region44
        $region43: #{tpu_custom_call.1} parent=31 // pred_region
          %s352 = sand.u32 %s23, 1
          %s353 = scalar_lea.sflag [#allocation6], %s352
          %s354 = sand.u32 %s119, 1
          %s355 = smul.addr %s354, 16
          %s356 = scalar_lea.vmem [#allocation7], %s355
          %s357 = sadd.s32 %s31, 1
          %s358 = smul.u32 %s357, 8
          %p359 = scmp.lt.s32.totalorder %s358, 15
          %s360 = scalar_select %p359, %s358, 15
          %s362 = ssub.s32 256, 256
          %363 = vsyncadd %s353, %s362
          %s364 = smul.addr %s360, 2
          %s365 = smul.addr %s30, 32
          %s366 = sadd.s32 %s364, %s365
          %s367 = smul.addr %s366, 128
          %s368 = scalar_lea.hbm %s2, %s367
          %s369 = sshll.u32 %s356, 4
          %s370 = int_to_ptr.vmem [resolvable:$true] %s369
          %375 = dma.hbm_to_vmem [thread:$0]  %s368, 256, %s370, %s353, 128, 128, 8
        $region44: #{tpu_custom_call.1} parent=31 // pred_fallthru
          _
      $region32: #{tpu_custom_call.1} parent=5 // pred_fallthru
        _
      %p376 = scmp.le.s32.totalorder 1, %s23
      %p377 = scmp.lt.s32.totalorder %s23, 5
      %p378 = pnand %p376, %p377
      %p379 = pneg %p378
      // Predicated region
      $region45: #{tpu_custom_call.1} parent=5 // pred_check
        _
      $region46: #{tpu_custom_call.1} parent=5 // pred_check_branch
        %381 = sbr.rel (%p378) target = $region48
      $region47: #{tpu_custom_call.1} parent=5 // pred_region
        %s382 = ssub.s32 %s23, 1
        %s383 = sand.u32 %s58, 1
        %s384 = scalar_lea.sflag [#allocation3], %s383
        %s385 = sand.u32 %s58, 1
        %s386 = smul.addr %s385, 16
        %s387 = scalar_lea.vmem [#allocation2], %s386
        // Predicated region
        $region49: #{tpu_custom_call.1} parent=47 // pred_check
          %p388 = pneg %p71
        $region50: #{tpu_custom_call.1} parent=47 // pred_check_branch
          %390 = sbr.rel (%p388) target = $region52
        $region51: #{tpu_custom_call.1} parent=47 // pred_region
          %391 = dma.done %s384, 256
        $region52: #{tpu_custom_call.1} parent=47 // pred_fallthru
          _
        %s392 = sand.u32 %s28, 1
        %s393 = scalar_lea.sflag [#allocation6], %s392
        %s394 = sand.u32 %s86, 1
        %s395 = smul.addr %s394, 128
        %s396 = scalar_lea.vmem [#allocation5], %s395
        // Predicated region
        $region53: #{tpu_custom_call.1} parent=47 // pred_check
          %p397 = pneg %p99
        $region54: #{tpu_custom_call.1} parent=47 // pred_check_branch
          %399 = sbr.rel (%p397) target = $region56
        $region55: #{tpu_custom_call.1} parent=47 // pred_region
          %400 = dma.done %s393, 2048
        $region56: #{tpu_custom_call.1} parent=47 // pred_fallthru
          _
        %s401 = sand.u32 %s28, 1
        %s402 = scalar_lea.sflag [#allocation6], %s401
        %s403 = sand.u32 %s122, 1
        %s404 = smul.addr %s403, 16
        %s405 = scalar_lea.vmem [#allocation7], %s404
        // Predicated region
        $region57: #{tpu_custom_call.1} parent=47 // pred_check
          %p406 = pneg %p135
        $region58: #{tpu_custom_call.1} parent=47 // pred_check_branch
          %408 = sbr.rel (%p406) target = $region60
        $region59: #{tpu_custom_call.1} parent=47 // pred_region
          %409 = dma.done %s402, 256
        $region60: #{tpu_custom_call.1} parent=47 // pred_fallthru
          _
        // Predicated region
        $region61: #{tpu_custom_call.1} parent=47 // pred_check
          %p410 = pneg %p156
        $region62: #{tpu_custom_call.1} parent=47 // pred_check_branch
          %412 = sbr.rel (%p410) target = $region64
        $region63: #{tpu_custom_call.1} parent=47 // pred_region
          %413 = dma.done [#allocation9], 192
        $region64: #{tpu_custom_call.1} parent=47 // pred_fallthru
          _
        // Predicated region
        $region65: #{tpu_custom_call.1} parent=47 // pred_check
          %p414 = pneg %p198
        $region66: #{tpu_custom_call.1} parent=47 // pred_check_branch
          %416 = sbr.rel (%p414) target = $region68
        $region67: #{tpu_custom_call.1} parent=47 // pred_region
          %417 = dma.done [#allocation9], 1024
        $region68: #{tpu_custom_call.1} parent=47 // pred_fallthru
          _
        %s418 = sand.u32 %s58, 1
        %s419 = scalar_lea.sflag [#allocation3], %s418
        %s420 = sand.u32 %s58, 1
        %s421 = smul.addr %s420, 16
        %s422 = scalar_lea.vmem [#allocation2], %s421
        %p423 = pneg %p71
        %p424 = pneg %p68
        %s425 = sand.u32 %s28, 1
        %s426 = scalar_lea.sflag [#allocation6], %s425
        %s427 = sand.u32 %s86, 1
        %s428 = smul.addr %s427, 128
        %s429 = scalar_lea.vmem [#allocation5], %s428
        %p430 = pneg %p99
        %p431 = pneg %p96
        %s432 = sand.u32 %s28, 1
        %s433 = scalar_lea.sflag [#allocation6], %s432
        %s434 = sand.u32 %s122, 1
        %s435 = smul.addr %s434, 16
        %s436 = scalar_lea.vmem [#allocation7], %s435
        %p437 = pneg %p135
        %p438 = pneg %p132
        %p439 = pneg %p156
        %p440 = pneg %p153
        %p441 = pneg %p177
        %p442 = pneg %p174
        %p443 = pneg %p198
        %p444 = pneg %p195
        %p445 = pneg %p219
        %p446 = pneg %p216
        %p447 = pneg %p247
        %p448 = pneg %p244
        %s449 = sand.u32 %s234, 1
        %s450 = scalar_lea.sflag [#allocation4], %s449
        %s451 = sand.u32 %s234, 1
        %s452 = smul.addr %s451, 128
        %s453 = scalar_lea.vmem [#allocation11], %s452
        %s454 = smul.u32 %s33, 8
        %s455 = ssub.s32 %s454, 1
        %p456 = scmp.gt.s32.totalorder %s455, 0
        %s457 = scalar_select %p456, %s455, 0
        %s458 = smul.u32 8, %s33
        %s459 = sadd.s32 %s33, 1
        %s460 = smul.u32 %s459, 8
        %p461 = scmp.lt.s32.totalorder %s460, 15
        %s462 = scalar_select %p461, %s460, 15
        %s463 = smul.u32 8, %s33
        %v465 = vld [vmem:[%s396] sm:$0xff]
        %v466 = vld [vmem:[%s396 + $0x8] sm:$0xff]
        %v467 = vld [vmem:[%s396 + $0x10] sm:$0xff]
        %v468 = vld [vmem:[%s396 + $0x18] sm:$0xff]
        %v469 = vld [vmem:[%s396 + $0x20] sm:$0xff]
        %v470 = vld [vmem:[%s396 + $0x28] sm:$0xff]
        %v471 = vld [vmem:[%s396 + $0x30] sm:$0xff]
        %v472 = vld [vmem:[%s396 + $0x38] sm:$0xff]
        %v473 = vld [vmem:[%s396 + $0x40] sm:$0xff]
        %v474 = vld [vmem:[%s396 + $0x48] sm:$0xff]
        %v475 = vld [vmem:[%s396 + $0x50] sm:$0xff]
        %v476 = vld [vmem:[%s396 + $0x58] sm:$0xff]
        %v477 = vld [vmem:[%s396 + $0x60] sm:$0xff]
        %v478 = vld [vmem:[%s396 + $0x68] sm:$0xff]
        %v479 = vld [vmem:[%s396 + $0x70] sm:$0xff]
        %v480 = vld [vmem:[%s396 + $0x78] sm:$0xff]
        %v481 = vld [vmem:[%s387] sm:$0xff]
        %v482 = vld [vmem:[%s387 + $0x8] sm:$0xff]
        %p483 = scmp.gt.s32.totalorder %s33, 0
        %s484 = scalar_select %p483, 1, 0
        %s485 = scvt.s32.f32 %s484
        %v486 = vstv %s485
        %v487 = vmul.f32 %v481, %v486
        %v488 = vmul.f32 %v482, %v486
        %v489 = vld [vmem:[%s405] sm:$0xff]
        %v490 = vld [vmem:[%s405 + $0x8] sm:$0xff]
        %p491 = scmp.lt.s32.totalorder %s33, 1
        %s492 = scalar_select %p491, 1, 0
        %s493 = scvt.s32.f32 %s492
        %v494 = vstv %s493
        %v495 = vmul.f32 %v489, %v494
        %v496 = vmul.f32 %v490, %v494
        %v497 = vld [vmem:[#allocation8] sm:$0x1]
        %v498 = vlaneseq
        %v499 = vshrl.u32 %v498, 7
        %v500 = vsub.s32 0, %v499
        %v501 = vrot.slane %v497, %v500
        %v502 = vmul.f32 %v487, %v501
        %v503 = vmul.f32 %v488, %v501
        %v504 = vmul.f32 %v465, %v501
        %v505 = vmul.f32 %v466, %v501
        %v506 = vmul.f32 %v467, %v501
        %v507 = vmul.f32 %v468, %v501
        %v508 = vmul.f32 %v469, %v501
        %v509 = vmul.f32 %v470, %v501
        %v510 = vmul.f32 %v471, %v501
        %v511 = vmul.f32 %v472, %v501
        %v512 = vmul.f32 %v473, %v501
        %v513 = vmul.f32 %v474, %v501
        %v514 = vmul.f32 %v475, %v501
        %v515 = vmul.f32 %v476, %v501
        %v516 = vmul.f32 %v477, %v501
        %v517 = vmul.f32 %v478, %v501
        %s518 = scalar_lea.vmem [#allocation8], 4
        %v519 = vld [vmem:[%s518] sm:$0x1]
        %v520 = vlaneseq
        %v521 = vshrl.u32 %v520, 7
        %v522 = vsub.s32 0, %v521
        %v523 = vrot.slane %v519, %v522
        %v524 = vmul.f32 %v465, %v523
        %v525 = vmul.f32 %v466, %v523
        %v526 = vmul.f32 %v467, %v523
        %v527 = vmul.f32 %v468, %v523
        %v528 = vmul.f32 %v469, %v523
        %v529 = vmul.f32 %v470, %v523
        %v530 = vmul.f32 %v471, %v523
        %v531 = vmul.f32 %v472, %v523
        %v532 = vmul.f32 %v473, %v523
        %v533 = vmul.f32 %v474, %v523
        %v534 = vmul.f32 %v475, %v523
        %v535 = vmul.f32 %v476, %v523
        %v536 = vmul.f32 %v477, %v523
        %v537 = vmul.f32 %v478, %v523
        %v538 = vmul.f32 %v479, %v523
        %v539 = vmul.f32 %v480, %v523
        %v540 = vadd.f32 %v502, %v524
        %v541 = vadd.f32 %v503, %v525
        %v542 = vadd.f32 %v504, %v526
        %v543 = vadd.f32 %v505, %v527
        %v544 = vadd.f32 %v506, %v528
        %v545 = vadd.f32 %v507, %v529
        %v546 = vadd.f32 %v508, %v530
        %v547 = vadd.f32 %v509, %v531
        %v548 = vadd.f32 %v510, %v532
        %v549 = vadd.f32 %v511, %v533
        %v550 = vadd.f32 %v512, %v534
        %v551 = vadd.f32 %v513, %v535
        %v552 = vadd.f32 %v514, %v536
        %v553 = vadd.f32 %v515, %v537
        %v554 = vadd.f32 %v516, %v538
        %v555 = vadd.f32 %v517, %v539
        %s556 = scalar_lea.vmem [#allocation8], 8
        %v557 = vld [vmem:[%s556] sm:$0x1]
        %v558 = vlaneseq
        %v559 = vshrl.u32 %v558, 7
        %v560 = vsub.s32 0, %v559
        %v561 = vrot.slane %v557, %v560
        %v562 = vmul.f32 %v467, %v561
        %v563 = vmul.f32 %v468, %v561
        %v564 = vmul.f32 %v469, %v561
        %v565 = vmul.f32 %v470, %v561
        %v566 = vmul.f32 %v471, %v561
        %v567 = vmul.f32 %v472, %v561
        %v568 = vmul.f32 %v473, %v561
        %v569 = vmul.f32 %v474, %v561
        %v570 = vmul.f32 %v475, %v561
        %v571 = vmul.f32 %v476, %v561
        %v572 = vmul.f32 %v477, %v561
        %v573 = vmul.f32 %v478, %v561
        %v574 = vmul.f32 %v479, %v561
        %v575 = vmul.f32 %v480, %v561
        %v576 = vmul.f32 %v495, %v561
        %v577 = vmul.f32 %v496, %v561
        %v578 = vadd.f32 %v540, %v562
        %v579 = vadd.f32 %v541, %v563
        %v580 = vadd.f32 %v542, %v564
        %v581 = vadd.f32 %v543, %v565
        %v582 = vadd.f32 %v544, %v566
        %v583 = vadd.f32 %v545, %v567
        %v584 = vadd.f32 %v546, %v568
        %v585 = vadd.f32 %v547, %v569
        %v586 = vadd.f32 %v548, %v570
        %v587 = vadd.f32 %v549, %v571
        %v588 = vadd.f32 %v550, %v572
        %v589 = vadd.f32 %v551, %v573
        %v590 = vadd.f32 %v552, %v574
        %v591 = vadd.f32 %v553, %v575
        %v592 = vadd.f32 %v554, %v576
        %v593 = vadd.f32 %v555, %v577
        %v594 = vld [vmem:[#allocation8 + $0x1] sm:$0x1]
        %v595 = vlaneseq
        %v596 = vshrl.u32 %v595, 7
        %v597 = vsub.s32 0, %v596
        %v598 = vrot.slane %v594, %v597
        %v599 = vmul.f32 %v487, %v598
        %v600 = vmul.f32 %v488, %v598
        %v601 = vmul.f32 %v465, %v598
        %v602 = vmul.f32 %v466, %v598
        %v603 = vmul.f32 %v467, %v598
        %v604 = vmul.f32 %v468, %v598
        %v605 = vmul.f32 %v469, %v598
        %v606 = vmul.f32 %v470, %v598
        %v607 = vmul.f32 %v471, %v598
        %v608 = vmul.f32 %v472, %v598
        %v609 = vmul.f32 %v473, %v598
        %v610 = vmul.f32 %v474, %v598
        %v611 = vmul.f32 %v475, %v598
        %v612 = vmul.f32 %v476, %v598
        %v613 = vmul.f32 %v477, %v598
        %v614 = vmul.f32 %v478, %v598
        %v615 = vld [vmem:[%s518 + $0x1] sm:$0x1]
        %v616 = vlaneseq
        %v617 = vshrl.u32 %v616, 7
        %v618 = vsub.s32 0, %v617
        %v619 = vrot.slane %v615, %v618
        %v620 = vmul.f32 %v465, %v619
        %v621 = vmul.f32 %v466, %v619
        %v622 = vmul.f32 %v467, %v619
        %v623 = vmul.f32 %v468, %v619
        %v624 = vmul.f32 %v469, %v619
        %v625 = vmul.f32 %v470, %v619
        %v626 = vmul.f32 %v471, %v619
        %v627 = vmul.f32 %v472, %v619
        %v628 = vmul.f32 %v473, %v619
        %v629 = vmul.f32 %v474, %v619
        %v630 = vmul.f32 %v475, %v619
        %v631 = vmul.f32 %v476, %v619
        %v632 = vmul.f32 %v477, %v619
        %v633 = vmul.f32 %v478, %v619
        %v634 = vmul.f32 %v479, %v619
        %v635 = vmul.f32 %v480, %v619
        %v636 = vadd.f32 %v599, %v620
        %v637 = vadd.f32 %v600, %v621
        %v638 = vadd.f32 %v601, %v622
        %v639 = vadd.f32 %v602, %v623
        %v640 = vadd.f32 %v603, %v624
        %v641 = vadd.f32 %v604, %v625
        %v642 = vadd.f32 %v605, %v626
        %v643 = vadd.f32 %v606, %v627
        %v644 = vadd.f32 %v607, %v628
        %v645 = vadd.f32 %v608, %v629
        %v646 = vadd.f32 %v609, %v630
        %v647 = vadd.f32 %v610, %v631
        %v648 = vadd.f32 %v611, %v632
        %v649 = vadd.f32 %v612, %v633
        %v650 = vadd.f32 %v613, %v634
        %v651 = vadd.f32 %v614, %v635
        %v652 = vld [vmem:[%s556 + $0x1] sm:$0x1]
        %v653 = vlaneseq
        %v654 = vshrl.u32 %v653, 7
        %v655 = vsub.s32 0, %v654
        %v656 = vrot.slane %v652, %v655
        %v657 = vmul.f32 %v467, %v656
        %v658 = vmul.f32 %v468, %v656
        %v659 = vmul.f32 %v469, %v656
        %v660 = vmul.f32 %v470, %v656
        %v661 = vmul.f32 %v471, %v656
        %v662 = vmul.f32 %v472, %v656
        %v663 = vmul.f32 %v473, %v656
        %v664 = vmul.f32 %v474, %v656
        %v665 = vmul.f32 %v475, %v656
        %v666 = vmul.f32 %v476, %v656
        %v667 = vmul.f32 %v477, %v656
        %v668 = vmul.f32 %v478, %v656
        %v669 = vmul.f32 %v479, %v656
        %v670 = vmul.f32 %v480, %v656
        %v671 = vmul.f32 %v495, %v656
        %v672 = vmul.f32 %v496, %v656
        %v673 = vadd.f32 %v636, %v657
        %v674 = vadd.f32 %v637, %v658
        %v675 = vadd.f32 %v638, %v659
        %v676 = vadd.f32 %v639, %v660
        %v677 = vadd.f32 %v640, %v661
        %v678 = vadd.f32 %v641, %v662
        %v679 = vadd.f32 %v642, %v663
        %v680 = vadd.f32 %v643, %v664
        %v681 = vadd.f32 %v644, %v665
        %v682 = vadd.f32 %v645, %v666
        %v683 = vadd.f32 %v646, %v667
        %v684 = vadd.f32 %v647, %v668
        %v685 = vadd.f32 %v648, %v669
        %v686 = vadd.f32 %v649, %v670
        %v687 = vadd.f32 %v650, %v671
        %v688 = vadd.f32 %v651, %v672
        %v689 = vld [vmem:[#allocation8 + $0x2] sm:$0x1]
        %v690 = vlaneseq
        %v691 = vshrl.u32 %v690, 7
        %v692 = vsub.s32 0, %v691
        %v693 = vrot.slane %v689, %v692
        %v694 = vmul.f32 %v487, %v693
        %v695 = vmul.f32 %v488, %v693
        %v696 = vmul.f32 %v465, %v693
        %v697 = vmul.f32 %v466, %v693
        %v698 = vmul.f32 %v467, %v693
        %v699 = vmul.f32 %v468, %v693
        %v700 = vmul.f32 %v469, %v693
        %v701 = vmul.f32 %v470, %v693
        %v702 = vmul.f32 %v471, %v693
        %v703 = vmul.f32 %v472, %v693
        %v704 = vmul.f32 %v473, %v693
        %v705 = vmul.f32 %v474, %v693
        %v706 = vmul.f32 %v475, %v693
        %v707 = vmul.f32 %v476, %v693
        %v708 = vmul.f32 %v477, %v693
        %v709 = vmul.f32 %v478, %v693
        %v710 = vld [vmem:[%s518 + $0x2] sm:$0x1]
        %v711 = vlaneseq
        %v712 = vshrl.u32 %v711, 7
        %v713 = vsub.s32 0, %v712
        %v714 = vrot.slane %v710, %v713
        %v715 = vmul.f32 %v465, %v714
        %v716 = vmul.f32 %v466, %v714
        %v717 = vmul.f32 %v467, %v714
        %v718 = vmul.f32 %v468, %v714
        %v719 = vmul.f32 %v469, %v714
        %v720 = vmul.f32 %v470, %v714
        %v721 = vmul.f32 %v471, %v714
        %v722 = vmul.f32 %v472, %v714
        %v723 = vmul.f32 %v473, %v714
        %v724 = vmul.f32 %v474, %v714
        %v725 = vmul.f32 %v475, %v714
        %v726 = vmul.f32 %v476, %v714
        %v727 = vmul.f32 %v477, %v714
        %v728 = vmul.f32 %v478, %v714
        %v729 = vmul.f32 %v479, %v714
        %v730 = vmul.f32 %v480, %v714
        %v731 = vadd.f32 %v694, %v715
        %v732 = vadd.f32 %v695, %v716
        %v733 = vadd.f32 %v696, %v717
        %v734 = vadd.f32 %v697, %v718
        %v735 = vadd.f32 %v698, %v719
        %v736 = vadd.f32 %v699, %v720
        %v737 = vadd.f32 %v700, %v721
        %v738 = vadd.f32 %v701, %v722
        %v739 = vadd.f32 %v702, %v723
        %v740 = vadd.f32 %v703, %v724
        %v741 = vadd.f32 %v704, %v725
        %v742 = vadd.f32 %v705, %v726
        %v743 = vadd.f32 %v706, %v727
        %v744 = vadd.f32 %v707, %v728
        %v745 = vadd.f32 %v708, %v729
        %v746 = vadd.f32 %v709, %v730
        %v747 = vld [vmem:[%s556 + $0x2] sm:$0x1]
        %v748 = vlaneseq
        %v749 = vshrl.u32 %v748, 7
        %v750 = vsub.s32 0, %v749
        %v751 = vrot.slane %v747, %v750
        %v752 = vmul.f32 %v467, %v751
        %v753 = vmul.f32 %v468, %v751
        %v754 = vmul.f32 %v469, %v751
        %v755 = vmul.f32 %v470, %v751
        %v756 = vmul.f32 %v471, %v751
        %v757 = vmul.f32 %v472, %v751
        %v758 = vmul.f32 %v473, %v751
        %v759 = vmul.f32 %v474, %v751
        %v760 = vmul.f32 %v475, %v751
        %v761 = vmul.f32 %v476, %v751
        %v762 = vmul.f32 %v477, %v751
        %v763 = vmul.f32 %v478, %v751
        %v764 = vmul.f32 %v479, %v751
        %v765 = vmul.f32 %v480, %v751
        %v766 = vmul.f32 %v495, %v751
        %v767 = vmul.f32 %v496, %v751
        %v768 = vadd.f32 %v731, %v752
        %v769 = vadd.f32 %v732, %v753
        %v770 = vadd.f32 %v733, %v754
        %v771 = vadd.f32 %v734, %v755
        %v772 = vadd.f32 %v735, %v756
        %v773 = vadd.f32 %v736, %v757
        %v774 = vadd.f32 %v737, %v758
        %v775 = vadd.f32 %v738, %v759
        %v776 = vadd.f32 %v739, %v760
        %v777 = vadd.f32 %v740, %v761
        %v778 = vadd.f32 %v741, %v762
        %v779 = vadd.f32 %v742, %v763
        %v780 = vadd.f32 %v743, %v764
        %v781 = vadd.f32 %v744, %v765
        %v782 = vadd.f32 %v745, %v766
        %v783 = vadd.f32 %v746, %v767
        %vm800 = vcmask 1040384
        %v801 = vrot.slane %v578, 7
        %v802 = vrot.slane %v579, 7
        %v803 = vsel %vm800, %v801, %v802
        %v804 = vrot.slane %v580, 7
        %v805 = vrot.slane %v581, 7
        %v806 = vsel %vm800, %v804, %v805
        %v807 = vrot.slane %v582, 7
        %v808 = vrot.slane %v583, 7
        %v809 = vsel %vm800, %v807, %v808
        %v810 = vrot.slane %v584, 7
        %v811 = vrot.slane %v585, 7
        %v812 = vsel %vm800, %v810, %v811
        %v813 = vrot.slane %v586, 7
        %v814 = vrot.slane %v587, 7
        %v815 = vsel %vm800, %v813, %v814
        %v816 = vrot.slane %v588, 7
        %v817 = vrot.slane %v589, 7
        %v818 = vsel %vm800, %v816, %v817
        %v819 = vrot.slane %v590, 7
        %v820 = vrot.slane %v591, 7
        %v821 = vsel %vm800, %v819, %v820
        %v822 = vrot.slane %v592, 7
        %v823 = vrot.slane %v593, 7
        %v824 = vsel %vm800, %v822, %v823
        %v841 = vsel %vm800, 0.0, %v801
        %v842 = vsel %vm800, 0.0, %v804
        %v843 = vsel %vm800, 0.0, %v807
        %v844 = vsel %vm800, 0.0, %v810
        %v845 = vsel %vm800, 0.0, %v813
        %v846 = vsel %vm800, 0.0, %v816
        %v847 = vsel %vm800, 0.0, %v819
        %v848 = vsel %vm800, 0.0, %v822
        %vm865 = vcmask 1046528
        %v866 = vrot.slane %v768, 1
        %v867 = vrot.slane %v769, 1
        %v868 = vsel %vm865, %v866, %v867
        %v869 = vrot.slane %v770, 1
        %v870 = vrot.slane %v771, 1
        %v871 = vsel %vm865, %v869, %v870
        %v872 = vrot.slane %v772, 1
        %v873 = vrot.slane %v773, 1
        %v874 = vsel %vm865, %v872, %v873
        %v875 = vrot.slane %v774, 1
        %v876 = vrot.slane %v775, 1
        %v877 = vsel %vm865, %v875, %v876
        %v878 = vrot.slane %v776, 1
        %v879 = vrot.slane %v777, 1
        %v880 = vsel %vm865, %v878, %v879
        %v881 = vrot.slane %v778, 1
        %v882 = vrot.slane %v779, 1
        %v883 = vsel %vm865, %v881, %v882
        %v884 = vrot.slane %v780, 1
        %v885 = vrot.slane %v781, 1
        %v886 = vsel %vm865, %v884, %v885
        %v887 = vrot.slane %v782, 1
        %v888 = vrot.slane %v783, 1
        %v889 = vsel %vm865, %v887, %v888
        %v906 = vsel %vm865, %v867, 0.0
        %v907 = vsel %vm865, %v870, 0.0
        %v908 = vsel %vm865, %v873, 0.0
        %v909 = vsel %vm865, %v876, 0.0
        %v910 = vsel %vm865, %v879, 0.0
        %v911 = vsel %vm865, %v882, 0.0
        %v912 = vsel %vm865, %v885, 0.0
        %v913 = vsel %vm865, %v888, 0.0
        %v914 = vadd.f32 %v841, %v673
        %v915 = vadd.f32 %v803, %v674
        %v916 = vadd.f32 %v842, %v675
        %v917 = vadd.f32 %v806, %v676
        %v918 = vadd.f32 %v843, %v677
        %v919 = vadd.f32 %v809, %v678
        %v920 = vadd.f32 %v844, %v679
        %v921 = vadd.f32 %v812, %v680
        %v922 = vadd.f32 %v845, %v681
        %v923 = vadd.f32 %v815, %v682
        %v924 = vadd.f32 %v846, %v683
        %v925 = vadd.f32 %v818, %v684
        %v926 = vadd.f32 %v847, %v685
        %v927 = vadd.f32 %v821, %v686
        %v928 = vadd.f32 %v848, %v687
        %v929 = vadd.f32 %v824, %v688
        %v930 = vadd.f32 %v914, %v868
        %v931 = vadd.f32 %v915, %v906
        %v932 = vadd.f32 %v916, %v871
        %v933 = vadd.f32 %v917, %v907
        %v934 = vadd.f32 %v918, %v874
        %v935 = vadd.f32 %v919, %v908
        %v936 = vadd.f32 %v920, %v877
        %v937 = vadd.f32 %v921, %v909
        %v938 = vadd.f32 %v922, %v880
        %v939 = vadd.f32 %v923, %v910
        %v940 = vadd.f32 %v924, %v883
        %v941 = vadd.f32 %v925, %v911
        %v942 = vadd.f32 %v926, %v886
        %v943 = vadd.f32 %v927, %v912
        %v944 = vadd.f32 %v928, %v889
        %v945 = vadd.f32 %v929, %v913
        %v946 = vld [vmem:[%s4] sm:$0x1]
        %v948 = vlaneseq
        %v949 = vshrl.u32 %v948, 7
        %v950 = vsub.s32 0, %v949
        %v951 = vrot.slane %v946, %v950
        %v953 = vadd.f32 %v930, %v951
        %v954 = vadd.f32 %v931, %v951
        %v955 = vadd.f32 %v932, %v951
        %v956 = vadd.f32 %v933, %v951
        %v957 = vadd.f32 %v934, %v951
        %v958 = vadd.f32 %v935, %v951
        %v959 = vadd.f32 %v936, %v951
        %v960 = vadd.f32 %v937, %v951
        %v961 = vadd.f32 %v938, %v951
        %v962 = vadd.f32 %v939, %v951
        %v963 = vadd.f32 %v940, %v951
        %v964 = vadd.f32 %v941, %v951
        %v965 = vadd.f32 %v942, %v951
        %v966 = vadd.f32 %v943, %v951
        %v967 = vadd.f32 %v944, %v951
        %v968 = vadd.f32 %v945, %v951
        %v969 = vmax.f32 %v953, 0.0
        %v970 = vmax.f32 %v954, 0.0
        %v971 = vmax.f32 %v955, 0.0
        %v972 = vmax.f32 %v956, 0.0
        %v973 = vmax.f32 %v957, 0.0
        %v974 = vmax.f32 %v958, 0.0
        %v975 = vmax.f32 %v959, 0.0
        %v976 = vmax.f32 %v960, 0.0
        %v977 = vmax.f32 %v961, 0.0
        %v978 = vmax.f32 %v962, 0.0
        %v979 = vmax.f32 %v963, 0.0
        %v980 = vmax.f32 %v964, 0.0
        %v981 = vmax.f32 %v965, 0.0
        %v982 = vmax.f32 %v966, 0.0
        %v983 = vmax.f32 %v967, 0.0
        %v984 = vmax.f32 %v968, 0.0
        %v985 = vpack.c.bf16 %v970, %v969
        %v986 = vpack.c.bf16 %v972, %v971
        %v987 = vpack.c.bf16 %v974, %v973
        %v988 = vpack.c.bf16 %v976, %v975
        %v989 = vpack.c.bf16 %v978, %v977
        %v990 = vpack.c.bf16 %v980, %v979
        %v991 = vpack.c.bf16 %v982, %v981
        %v992 = vpack.c.bf16 %v984, %v983
        %v993 = vld [vmem:[#allocation10] sm:$0xf]
        %v994 = vld [vmem:[#allocation10 + $0x4] sm:$0xf]
        %v995 = vld [vmem:[#allocation10 + $0x8] sm:$0xf]
        %v996 = vld [vmem:[#allocation10 + $0xc] sm:$0xf]
        %v997 = vld [vmem:[#allocation10 + $0x10] sm:$0xf]
        %v998 = vld [vmem:[#allocation10 + $0x14] sm:$0xf]
        %v999 = vld [vmem:[#allocation10 + $0x18] sm:$0xf]
        %v1000 = vld [vmem:[#allocation10 + $0x1c] sm:$0xf]
        %v1001 = vld [vmem:[#allocation10 + $0x20] sm:$0xf]
        %v1002 = vld [vmem:[#allocation10 + $0x24] sm:$0xf]
        %v1003 = vld [vmem:[#allocation10 + $0x28] sm:$0xf]
        %v1004 = vld [vmem:[#allocation10 + $0x2c] sm:$0xf]
        %v1005 = vld [vmem:[#allocation10 + $0x30] sm:$0xf]
        %v1006 = vld [vmem:[#allocation10 + $0x34] sm:$0xf]
        %v1007 = vld [vmem:[#allocation10 + $0x38] sm:$0xf]
        %v1008 = vld [vmem:[#allocation10 + $0x3c] sm:$0xf]
        %v1009 = vld [vmem:[%s6] sm:$0x1]
        %v1011 = vlaneseq
        %v1012 = vshrl.u32 %v1011, 7
        %v1013 = vsub.s32 0, %v1012
        %v1014 = vrot.slane %v1009, %v1013
        %v1032 = vunpack.c.l.b16 %v993
        %v1033 = vunpack.c.l.b16 %v994
        %v1034 = vunpack.c.l.b16 %v995
        %v1035 = vunpack.c.l.b16 %v996
        %v1036 = vunpack.c.l.b16 %v997
        %v1037 = vunpack.c.l.b16 %v998
        %v1038 = vunpack.c.l.b16 %v999
        %v1039 = vunpack.c.l.b16 %v1000
        %v1040 = vunpack.c.l.b16 %v1001
        %v1041 = vunpack.c.l.b16 %v1002
        %v1042 = vunpack.c.l.b16 %v1003
        %v1043 = vunpack.c.l.b16 %v1004
        %v1044 = vunpack.c.l.b16 %v1005
        %v1045 = vunpack.c.l.b16 %v1006
        %v1046 = vunpack.c.l.b16 %v1007
        %v1047 = vunpack.c.l.b16 %v1008
        %v1048 = vpack.c.b16 %v1033, %v1032
        %v1049 = vpack.c.b16 %v1035, %v1034
        %v1050 = vpack.c.b16 %v1037, %v1036
        %v1051 = vpack.c.b16 %v1039, %v1038
        %v1052 = vpack.c.b16 %v1041, %v1040
        %v1053 = vpack.c.b16 %v1043, %v1042
        %v1054 = vpack.c.b16 %v1045, %v1044
        %v1055 = vpack.c.b16 %v1047, %v1046
        %1064 = vmatprep.subr.bf16.mxu0 0
        %1065 = vmatpush1.bf16.msra.mxu0 %v1048
        %1066 = vmatprep.subr.bf16.mxu0 0
        %1067 = vmatpush1.bf16.msra.mxu0 %v1049
        %1068 = vmatprep.subr.bf16.mxu0 0
        %1069 = vmatpush1.bf16.msra.mxu0 %v1050
        %1070 = vmatprep.subr.bf16.mxu0 0
        %1071 = vmatpush1.bf16.msra.mxu0 %v1051
        %1072 = vmatprep.subr.bf16.mxu0 0
        %1073 = vmatpush1.bf16.msra.mxu0 %v1052
        %1074 = vmatprep.subr.bf16.mxu0 0
        %1075 = vmatpush1.bf16.msra.mxu0 %v1053
        %1076 = vmatprep.subr.bf16.mxu0 0
        %1077 = vmatpush1.bf16.msra.mxu0 %v1054
        %1078 = vmatprep.subr.bf16.mxu0 0
        %1079 = vmatpush1.bf16.msra.mxu0 %v1055
        %1080 = vmatprep.subr.bf16.mxu0 0
        %1081 = vmatpush1.bf16.msra.mxu0 0
        %1082 = vmatprep.subr.bf16.mxu0 0
        %1083 = vmatpush1.bf16.msra.mxu0 0
        %1084 = vmatprep.subr.bf16.mxu0 0
        %1085 = vmatpush1.bf16.msra.mxu0 0
        %1086 = vmatprep.subr.bf16.mxu0 0
        %1087 = vmatpush1.bf16.msra.mxu0 0
        %1088 = vmatprep.subr.bf16.mxu0 0
        %1089 = vmatpush1.bf16.msra.mxu0 0
        %1090 = vmatprep.subr.bf16.mxu0 0
        %1091 = vmatpush1.bf16.msra.mxu0 0
        %1092 = vmatprep.subr.bf16.mxu0 0
        %1093 = vmatpush1.bf16.msra.mxu0 0
        %1094 = vmatprep.subr.bf16.mxu0 0
        %1095 = vmatpush1.bf16.msra.mxu0 0
        %1096 = vmatprep.mubr.bf16.mxu0 0
        %1097 = vmatmul.mubr.bf16.gmra.mrb[0].mxu0 %v985
        %v1098 = vpop.f32.mrb[0].mxu0
        %v1099 = vadd.f32 %v1014, %v1098
        %v1100 = vpop.f32.mrb[0].mxu0
        %v1101 = vpop.f32.mrb[0].mxu0
        %v1102 = vadd.f32 %v1014, %v1101
        %v1103 = vpop.f32.mrb[0].mxu0
        %1104 = vmatprep.mubr.bf16.mxu0 0
        %1105 = vmatmul.mubr.bf16.gmra.mrb[0].mxu0 %v986
        %v1106 = vpop.f32.mrb[0].mxu0
        %v1107 = vadd.f32 %v1014, %v1106
        %v1108 = vpop.f32.mrb[0].mxu0
        %v1109 = vpop.f32.mrb[0].mxu0
        %v1110 = vadd.f32 %v1014, %v1109
        %v1111 = vpop.f32.mrb[0].mxu0
        %1112 = vmatprep.mubr.bf16.mxu0 0
        %1113 = vmatmul.mubr.bf16.gmra.mrb[0].mxu0 %v987
        %v1114 = vpop.f32.mrb[0].mxu0
        %v1115 = vadd.f32 %v1014, %v1114
        %v1116 = vpop.f32.mrb[0].mxu0
        %v1117 = vpop.f32.mrb[0].mxu0
        %v1118 = vadd.f32 %v1014, %v1117
        %v1119 = vpop.f32.mrb[0].mxu0
        %1120 = vmatprep.mubr.bf16.mxu0 0
        %1121 = vmatmul.mubr.bf16.gmra.mrb[0].mxu0 %v988
        %v1122 = vpop.f32.mrb[0].mxu0
        %v1123 = vadd.f32 %v1014, %v1122
        %v1124 = vpop.f32.mrb[0].mxu0
        %v1125 = vpop.f32.mrb[0].mxu0
        %v1126 = vadd.f32 %v1014, %v1125
        %v1127 = vpop.f32.mrb[0].mxu0
        %1128 = vmatprep.mubr.bf16.mxu0 0
        %1129 = vmatmul.mubr.bf16.gmra.mrb[0].mxu0 %v989
        %v1130 = vpop.f32.mrb[0].mxu0
        %v1131 = vadd.f32 %v1014, %v1130
        %v1132 = vpop.f32.mrb[0].mxu0
        %v1133 = vpop.f32.mrb[0].mxu0
        %v1134 = vadd.f32 %v1014, %v1133
        %v1135 = vpop.f32.mrb[0].mxu0
        %1136 = vmatprep.mubr.bf16.mxu0 0
        %1137 = vmatmul.mubr.bf16.gmra.mrb[0].mxu0 %v990
        %v1138 = vpop.f32.mrb[0].mxu0
        %v1139 = vadd.f32 %v1014, %v1138
        %v1140 = vpop.f32.mrb[0].mxu0
        %v1141 = vpop.f32.mrb[0].mxu0
        %v1142 = vadd.f32 %v1014, %v1141
        %v1143 = vpop.f32.mrb[0].mxu0
        %1144 = vmatprep.mubr.bf16.mxu0 0
        %1145 = vmatmul.mubr.bf16.gmra.mrb[0].mxu0 %v991
        %v1146 = vpop.f32.mrb[0].mxu0
        %v1147 = vadd.f32 %v1014, %v1146
        %v1148 = vpop.f32.mrb[0].mxu0
        %v1149 = vpop.f32.mrb[0].mxu0
        %v1150 = vadd.f32 %v1014, %v1149
        %v1151 = vpop.f32.mrb[0].mxu0
        %1152 = vmatprep.mubr.bf16.mxu0 0
        %1153 = vmatmul.mubr.bf16.gmra.mrb[0].mxu0 %v992
        %v1154 = vpop.f32.mrb[0].mxu0
        %v1155 = vadd.f32 %v1014, %v1154
        %v1156 = vpop.f32.mrb[0].mxu0
        %v1157 = vpop.f32.mrb[0].mxu0
        %v1158 = vadd.f32 %v1014, %v1157
        %v1159 = vpop.f32.mrb[0].mxu0
        %1160 = vdwg.mxu0
        %v1161 = vmax.f32 %v1099, 0.0
        %v1162 = vmax.f32 %v1102, 0.0
        %v1163 = vmax.f32 %v1107, 0.0
        %v1164 = vmax.f32 %v1110, 0.0
        %v1165 = vmax.f32 %v1115, 0.0
        %v1166 = vmax.f32 %v1118, 0.0
        %v1167 = vmax.f32 %v1123, 0.0
        %v1168 = vmax.f32 %v1126, 0.0
        %v1169 = vmax.f32 %v1131, 0.0
        %v1170 = vmax.f32 %v1134, 0.0
        %v1171 = vmax.f32 %v1139, 0.0
        %v1172 = vmax.f32 %v1142, 0.0
        %v1173 = vmax.f32 %v1147, 0.0
        %v1174 = vmax.f32 %v1150, 0.0
        %v1175 = vmax.f32 %v1155, 0.0
        %v1176 = vmax.f32 %v1158, 0.0
        %1177 = vst [vmem:[%s453] sm:$0xff] %v1161
        %1178 = vst [vmem:[%s453 + $0x8] sm:$0xff] %v1162
        %1179 = vst [vmem:[%s453 + $0x10] sm:$0xff] %v1163
        %1180 = vst [vmem:[%s453 + $0x18] sm:$0xff] %v1164
        %1181 = vst [vmem:[%s453 + $0x20] sm:$0xff] %v1165
        %1182 = vst [vmem:[%s453 + $0x28] sm:$0xff] %v1166
        %1183 = vst [vmem:[%s453 + $0x30] sm:$0xff] %v1167
        %1184 = vst [vmem:[%s453 + $0x38] sm:$0xff] %v1168
        %1185 = vst [vmem:[%s453 + $0x40] sm:$0xff] %v1169
        %1186 = vst [vmem:[%s453 + $0x48] sm:$0xff] %v1170
        %1187 = vst [vmem:[%s453 + $0x50] sm:$0xff] %v1171
        %1188 = vst [vmem:[%s453 + $0x58] sm:$0xff] %v1172
        %1189 = vst [vmem:[%s453 + $0x60] sm:$0xff] %v1173
        %1190 = vst [vmem:[%s453 + $0x68] sm:$0xff] %v1174
        %1191 = vst [vmem:[%s453 + $0x70] sm:$0xff] %v1175
        %1192 = vst [vmem:[%s453 + $0x78] sm:$0xff] %v1176
        %s1193 = sand.u32 %s234, 1
        %s1194 = scalar_lea.sflag [#allocation4], %s1193
        %s1195 = sand.u32 %s234, 1
        %s1196 = smul.addr %s1195, 128
        %s1197 = scalar_lea.vmem [#allocation11], %s1196
        // Predicated region
        $region69: #{tpu_custom_call.1} parent=47 // pred_check
          %p1198 = pneg %p244
        $region70: #{tpu_custom_call.1} parent=47 // pred_check_branch
          %1200 = sbr.rel (%p1198) target = $region72
        $region71: #{tpu_custom_call.1} parent=47 // pred_region
          %s1201 = smul.u32 8, %s33
          %s1203 = ssub.s32 2048, 2048
          %1204 = vsyncadd %s1194, %s1203
          %s1205 = smul.addr %s1201, 2
          %s1206 = smul.addr %s32, 32
          %s1207 = sadd.s32 %s1205, %s1206
          %s1208 = smul.addr %s1207, 128
          %s1209 = scalar_lea.hbm %s7, %s1208
          %s1210 = sshll.u32 %s1197, 4
          %s1211 = int_to_ptr.vmem [resolvable:$true] %s1210
          %1216 = dma.vmem_to_hbm [thread:$0]  %s1211, 2048, %s1209, %s1194, 128, 128, 8
        $region72: #{tpu_custom_call.1} parent=47 // pred_fallthru
          _
      $region48: #{tpu_custom_call.1} parent=5 // pred_fallthru
        _
      %p1217 = scmp.le.s32.totalorder 2, %s23
      // Predicated region
      $region73: #{tpu_custom_call.1} parent=5 // pred_check
        %p1218 = pneg %p1217
      $region74: #{tpu_custom_call.1} parent=5 // pred_check_branch
        %1220 = sbr.rel (%p1218) target = $region76
      $region75: #{tpu_custom_call.1} parent=5 // pred_region
        %s1221 = ssub.s32 %s23, 2
        // Predicated region
        $region77: #{tpu_custom_call.1} parent=75 // pred_check
          %p1222 = pneg %p250
        $region78: #{tpu_custom_call.1} parent=75 // pred_check_branch
          %1224 = sbr.rel (%p1222) target = $region80
        $region79: #{tpu_custom_call.1} parent=75 // pred_region
          %s1225 = sand.u32 %s235, 1
          %s1226 = scalar_lea.sflag [#allocation4], %s1225
          %s1227 = sand.u32 %s235, 1
          %s1228 = smul.addr %s1227, 128
          %s1229 = scalar_lea.vmem [#allocation11], %s1228
          %1230 = dma.done %s1226, 2048
        $region80: #{tpu_custom_call.1} parent=75 // pred_fallthru
          _
      $region76: #{tpu_custom_call.1} parent=5 // pred_fallthru
        _
    $region6: #{tpu_custom_call.1} parent=1 // loop_footer
      %s27 = sadd.s32 1, %s23
    $region7: #{tpu_custom_call.1} parent=1 // loop_footer_branch
      %22 = sbr.rel target = $region3
    $region8: #{tpu_custom_call.1} parent=1 // loop_exit
      _
    %1231 = vsyncpa [#allocation3], 1
    %s1232 = scalar_lea.sflag [#allocation3], 1
    %1233 = vsyncpa %s1232, 1
    %1234 = vsyncpa [#allocation6], 1
    %s1235 = scalar_lea.sflag [#allocation6], 1
    %1236 = vsyncpa %s1235, 1
    %1237 = vsyncpa [#allocation9], 1
    %1238 = vsyncpa [#allocation4], 1
    %s1239 = scalar_lea.sflag [#allocation4], 1
    %1240 = vsyncpa %s1239, 1

</llo_original>
